<compile_context>
chip_gen: v7x
topology: tpu7x:2x2x1
jax: 0.10.0
libtpu: 0.0.40
codegen_flags: <defaults>
</compile_context>

<pallas_src>
import jax
import jax.numpy as jnp
from jax.experimental import pallas as pl
from jax.experimental.pallas import tpu as pltpu


def _make_debug_copy_kernel(n_head: int, emit_device_print: bool):
    """Kernel over a (1, D) head slice.

    Bare identity copy by default. When `emit_device_print` is True, also
    emits the first `n_head` values via pl.debug_print (visible in interpret
    mode or with --xla_tpu_enable_log_recorder).
    """

    def kernel(x_ref, o_ref):
        x = x_ref[...]                      # (1, D) — a few lanes only
        o_ref[...] = x                      # aliased in/out -> trivial write-back
        if emit_device_print and n_head > 0:
            # f32 cast keeps scalar extraction/printing portable on v5e
            # (no bf16 VPU path there).
            vals = x[0, :n_head].astype(jnp.float32)
            fmt = "print_layer primeiros elementos:" + " {}" * n_head
            pl.debug_print(fmt, *(vals[i] for i in range(n_head)))

    return kernel


def debug_head(head: jax.Array, *, emit_device_print: bool = False) -> jax.Array:
    """Run the minimal gridless debug kernel on a (1, D) slice and return it."""
    _, D = head.shape
    n_head = min(5, D)
    compiler_params = (
        pltpu.CompilerParams(has_side_effects=True) if emit_device_print else None
    )
    return pl.pallas_call(
        _make_debug_copy_kernel(n_head, emit_device_print),
        out_shape=jax.ShapeDtypeStruct(head.shape, head.dtype),
        # Gridless, whole-array specs: no 1-step grid, no double-buffering
        # bookkeeping for a few-hundred-byte tile.
        in_specs=[pl.BlockSpec(memory_space=pltpu.MemorySpace.VMEM)],
        out_specs=pl.BlockSpec(memory_space=pltpu.MemorySpace.VMEM),
        # No fresh output allocation / writeback DMA for the head slice.
        input_output_aliases={0: 0},
        compiler_params=compiler_params,
    )(head)


class PrintLayer:
    """JAX/Pallas analogue of the PyTorch `print_layer` module."""

    def __init__(self, num: int, *, debug: bool = True,
                 use_pallas_kernel: bool = True, device_print: bool = False):
        self.num = num
        self.debug = debug                       # False -> pure identity in production
        self.use_pallas_kernel = use_pallas_kernel
        self.device_print = device_print          # in-kernel pl.debug_print (off by default)

    def __call__(self, emb: jax.Array) -> jax.Array:
        if not self.debug:
            # Production path: compiles to nothing at all.
            return emb

        # Static info: trace-time Python prints (no host callback in the
        # compiled program; under jit they fire once at trace time).
        print(f"Predicao apos camada {self.num}")
        print(f"shape de emb: {tuple(emb.shape)}")

        n_head = min(5, emb.shape[-1])
        head = emb[0:1, 0, :]                     # (1, D) slice; bulk of emb untouched
        if self.use_pallas_kernel:
            head = debug_head(head, emit_device_print=self.device_print)

        # Single host callback carrying the dynamic values.
        jax.debug.print("primeiros 5 elementos: {}", head[0, :n_head])

        # Identity: return the input directly — no full-tensor copy.
        return emb


if __name__ == "__main__":
    key = jax.random.PRNGKey(0)
    B, S, D = 2, 8, 32  # small shapes consistent with (batch, seq, hidden)
    emb = jax.random.normal(key, (B, S, D), dtype=jnp.float32)

    # Debug path (exercises the Pallas kernel).
    layer = PrintLayer(num=1, debug=True, use_pallas_kernel=True)
    out = jax.block_until_ready(layer(emb))
    assert out.shape == emb.shape and out.dtype == emb.dtype
    assert bool(jnp.array_equal(out, emb)), "identity semantics mismatch (debug)"

    # Production path: gated off -> pure identity, nothing else compiled in.
    prod_layer = PrintLayer(num=1, debug=False)
    out_prod = jax.block_until_ready(jax.jit(prod_layer.__call__)(emb))
    assert bool(jnp.array_equal(out_prod, emb)), "identity semantics mismatch (prod)"

    # Kernel-level exactness check on the head slice.
    head_out = jax.block_until_ready(debug_head(emb[0:1, 0, :]))
    assert bool(jnp.array_equal(head_out, emb[0:1, 0, :])), "debug head mismatch"

    print("KERNEL_OK")
</pallas_src>

<mosaic_0001>
module attributes {stable_mosaic.version = 11 : i64} {
  func.func @kernel(%arg0: memref<1x32xf32, #tpu.memory_space<vmem>>, %arg1: memref<1x32xf32, #tpu.memory_space<vmem>>) attributes {dimension_semantics = [], scalar_prefetch = 0 : i64, scratch_operands = 0 : i64, tpu.core_type = #tpu.core_type<tc>} {
    %c0 = arith.constant 0 : index
    %c0_0 = arith.constant 0 : index
    %0 = vector.load %arg0[%c0, %c0_0] : memref<1x32xf32, #tpu.memory_space<vmem>>, vector<1x32xf32>
    %c0_1 = arith.constant 0 : index
    %c0_2 = arith.constant 0 : index
    %1 = vector.load %arg1[%c0_1, %c0_2] : memref<1x32xf32, #tpu.memory_space<vmem>>, vector<1x32xf32>
    tpu.vector_store %arg1[%c0_1, %c0_2], %0 {strides = array<i32>} : memref<1x32xf32, #tpu.memory_space<vmem>>, vector<1x32xf32>,
    return
  }
}

</mosaic_0001>

<llo_original>
// kernel: tpu_custom_call.1
$region0: #{tpu_custom_call.1}
  #allocation0 [shape = 'u32[]', space=smem, size = 0x4, offset = 0x4, fixed_abs, tag = 'smem constant byte address 0x4 - core index']
  #allocation1 [shape = 'u32[144,128]{1,0:T(1,128)}', space=vmem, size = 0x12000, scoped, tag = 'internal scratch']
  %s0 = inlined_call_operand.hbm [shape: f32[1,32], index: 0, kind: input, shape index: {}, may-alias: {0,1}]
  %s1 = inlined_call_operand.hbm [shape: f32[1,32], index: 1, kind: output, shape index: {}, may-alias: {0,1}]
  %s2 = sld [smem:[#allocation0]]
  $region18: #{tpu_custom_call.1} parent=0
    _
  %s4 = ssub.s32 1, %s2
  %s5 = scalar_select 0, %s4, %s2
  $region1: #{tpu_custom_call.1} parent=0
    #allocation2 [shape = 'u8[512]{0}', space=vmem, size = 0x400, scoped, tag = 'input window, operand 0, single buffered']
    #allocation3 [shape = 's32[1]{0}', space=sflag, size = 0x4, scoped, tag = 'scoped memory for tpu_custom_call.1']
    #allocation4 [shape = 's32[1]{0}', space=sflag, size = 0x4, scoped, tag = 'scoped memory for tpu_custom_call.1']
    #allocation5 [shape = 'u8[512]{0}', space=vmem, size = 0x400, scoped, tag = 'output window, operand 0, single buffered']
    %6 = vsyncpa [#allocation3], 0
    %7 = vsyncpa [#allocation4], 0
    // Predicated region
    $region2: #{tpu_custom_call.1} parent=1 // pred_check
      _
    $region3: #{tpu_custom_call.1} parent=1 // pred_check_branch
      %9 = sbr.rel (0) target = $region5
    $region4: #{tpu_custom_call.1} parent=1 // pred_region
      %s11 = ssub.s32 16, 16
      %12 = vsyncadd [#allocation3], %s11
      %s14 = sshll.u32 [#allocation2], 4
      %s15 = int_to_ptr.vmem [resolvable:$true] %s14
      %17 = dma.hbm_to_vmem [thread:$0]  %s0, 16, %s15, [#allocation3]
    $region5: #{tpu_custom_call.1} parent=1 // pred_fallthru
      _
    // Predicated region
    $region6: #{tpu_custom_call.1} parent=1 // pred_check
      _
    $region7: #{tpu_custom_call.1} parent=1 // pred_check_branch
      %19 = sbr.rel (0) target = $region9
    $region8: #{tpu_custom_call.1} parent=1 // pred_region
      %20 = dma.done [#allocation3], 16
    $region9: #{tpu_custom_call.1} parent=1 // pred_fallthru
      _
    %v21 = vld [vmem:[#allocation2] sm:$0x1]
    %vm22 = vcmask 253952
    %23 = vst.msk [vmem:[#allocation5] sm:$0x1] %vm22, %v21
    // Predicated region
    $region10: #{tpu_custom_call.1} parent=1 // pred_check
      _
    $region11: #{tpu_custom_call.1} parent=1 // pred_check_branch
      %25 = sbr.rel (0) target = $region13
    $region12: #{tpu_custom_call.1} parent=1 // pred_region
      %s27 = ssub.s32 16, 16
      %28 = vsyncadd [#allocation4], %s27
      %s30 = sshll.u32 [#allocation5], 4
      %s31 = int_to_ptr.vmem [resolvable:$true] %s30
      %33 = dma.vmem_to_hbm [thread:$0]  %s31, 16, %s1, [#allocation4]
    $region13: #{tpu_custom_call.1} parent=1 // pred_fallthru
      _
    // Predicated region
    $region14: #{tpu_custom_call.1} parent=1 // pred_check
      _
    $region15: #{tpu_custom_call.1} parent=1 // pred_check_branch
      %35 = sbr.rel (0) target = $region17
    $region16: #{tpu_custom_call.1} parent=1 // pred_region
      %36 = dma.done [#allocation4], 16
    $region17: #{tpu_custom_call.1} parent=1 // pred_fallthru
      _
    %37 = vsyncpa [#allocation3], 1
    %38 = vsyncpa [#allocation4], 1

</llo_original>
